<compile_context>
chip_gen: v7x
topology: tpu7x:2x2x1
jax: 0.10.0
libtpu: 0.0.40
codegen_flags: <defaults>
</compile_context>

<pallas_src>
import functools

import jax
import jax.numpy as jnp
from jax.experimental import pallas as pl
from jax.experimental.pallas import tpu as pltpu


def _combined_loss_kernel(yp_ref, yt_ref, out_ref, acc_ref, *,
                          gamma, inv_n, ch_axis, mask_axis, valid_extent):
    """One (batch, spatial-tile) grid step.

    Block shapes:
      yp_ref / yt_ref : (1, D1, D2, L)   softmax/channel axis = ch_axis (1 or 2)
      out_ref         : (1, 1, 1)        per-batch partial loss
      acc_ref         : (1, 8, L) f32    lane-vector accumulators:
                          sublane 0: KL summand, 1: sum yp, 2: sum yt,
                          3: sum yp*yt, 4: sum yp^2, 5: sum yt^2,
                          6 / 7: per-batch pilot means of yp / yt.
    """
    t = pl.program_id(1)
    n_t = pl.num_programs(1)

    yp_raw = yp_ref[...].astype(jnp.float32)
    yt_raw = yt_ref[...].astype(jnp.float32)
    bt, d1, d2, lanes = yp_raw.shape

    if mask_axis is not None:
        tile_len = yp_raw.shape[mask_axis]
        pos = jax.lax.broadcasted_iota(jnp.int32, yp_raw.shape, mask_axis)
        mask = pos < (valid_extent - t * tile_len)
    else:
        mask = None

    # --- first spatial tile: reset accumulators, compute per-batch pilots ----
    @pl.when(t == 0)
    def _():
        acc_ref[...] = jnp.zeros_like(acc_ref)
        inv_cnt = 1.0 / float(d1 * d2 * lanes)
        yp0 = yp_raw if mask is None else jnp.where(mask, yp_raw, 0.0)
        yt0 = yt_raw if mask is None else jnp.where(mask, yt_raw, 0.0)
        pm = jnp.sum(yp0, axis=(1, 2, 3), keepdims=True).reshape(bt, 1, 1) * inv_cnt
        tm = jnp.sum(yt0, axis=(1, 2, 3), keepdims=True).reshape(bt, 1, 1) * inv_cnt
        acc_ref[:, 6:7, :] = jnp.broadcast_to(pm, (bt, 1, lanes))
        acc_ref[:, 7:8, :] = jnp.broadcast_to(tm, (bt, 1, lanes))

    # --- pilot shift (KL is shift-invariant; moments become near-centered) ---
    pilot_p = acc_ref[:, 6:7, :].reshape(bt, 1, 1, lanes)
    pilot_t = acc_ref[:, 7:8, :].reshape(bt, 1, 1, lanes)
    if mask is None:
        yp = yp_raw - pilot_p
        yt = yt_raw - pilot_t
    else:
        yp = jnp.where(mask, yp_raw - pilot_p, 0.0)
        yt = jnp.where(mask, yt_raw - pilot_t, 0.0)

    # --- KL(log_softmax(yp) || softmax(yt)) per spatial column, algebraic form:
    #       sum_c t_c (log t_c - log p_c)
    #         = (sum_c e^{yt_sh_c} (yt_sh_c - yp_sh_c)) / zt + log zp - log zt
    #     Masked (zeroed) columns contribute exactly 0.
    yp_sh = yp - jnp.max(yp, axis=ch_axis, keepdims=True)
    yt_sh = yt - jnp.max(yt, axis=ch_axis, keepdims=True)
    ep = jnp.exp(yp_sh)
    et = jnp.exp(yt_sh)
    zp = jnp.sum(ep, axis=ch_axis, keepdims=True)
    zt = jnp.sum(et, axis=ch_axis, keepdims=True)
    num = jnp.sum(et * (yt_sh - yp_sh), axis=ch_axis, keepdims=True)
    kl_col = num / zt + (jnp.log(zp) - jnp.log(zt))

    def lane_sum(x):                 # reduce channel + sublane axes only
        return jnp.sum(x, axis=(1, 2))[:, None, :]

    acc_ref[:, 0:1, :] += lane_sum(kl_col)
    acc_ref[:, 1:2, :] += lane_sum(yp)
    acc_ref[:, 2:3, :] += lane_sum(yt)
    acc_ref[:, 3:4, :] += lane_sum(yp * yt)
    acc_ref[:, 4:5, :] += lane_sum(yp * yp)
    acc_ref[:, 5:6, :] += lane_sum(yt * yt)

    # --- last spatial tile: one cross-lane reduce, finalize per-batch loss ---
    @pl.when(t == n_t - 1)
    def _():
        tot = jnp.sum(acc_ref[...], axis=2, keepdims=True)     # (1, 8, 1)
        kl = tot[:, 0:1, :]
        sp = tot[:, 1:2, :]
        st = tot[:, 2:3, :]
        spt = tot[:, 3:4, :]
        spp = tot[:, 4:5, :]
        stt = tot[:, 5:6, :]
        corr = spt - sp * st * inv_n
        var_p = spp - sp * sp * inv_n
        var_t = stt - st * st * inv_n
        std_p = jnp.sqrt(var_p + 1e-6)
        std_t = jnp.sqrt(var_t + 1e-6)
        cc = -corr / (std_p * std_t + 1e-6)
        # per-batch partial: gamma * kl_b + cc_b; wrapper's mean over B
        # reproduces gamma * KL_batchmean + mean_b(cc_b).
        out_ref[...] = gamma * kl + cc


def _cdiv(a, b):
    return -(-a // b)


def _ceil_to(x, m):
    return ((x + m - 1) // m) * m


def _vmem_capacity_bytes():
    try:
        return int(pltpu.get_tpu_info().vmem_capacity_bytes)
    except Exception:
        return 64 * 1024 * 1024      # conservative (v7x-sized) fallback


def combined_loss(y_pred, y_true, gamma=0.1, *,
                  block_budget_bytes=None, single_tile_bytes=None):
    assert y_pred.shape == y_true.shape and y_pred.ndim == 4
    B, C, H, W = y_pred.shape
    hw = H * W
    n_elems = C * hw
    itemsize = jnp.dtype(y_pred.dtype).itemsize

    # Per-generation VMEM budget.
    cap = _vmem_capacity_bytes()
    if cap >= (96 << 20):            # 128 MiB parts (v5e / v5p / v6e)
        default_block, vmem_limit = 4 << 20, 96 << 20
    elif cap >= (48 << 20):          # v7x: 64 MiB per TensorCore
        default_block, vmem_limit = 1 << 20, 32 << 20
    else:                            # unknown / small: stay at scoped default
        default_block, vmem_limit = 256 << 10, None
    if block_budget_bytes is None:
        block_budget_bytes = default_block
    if single_tile_bytes is None:
        single_tile_bytes = 256 << 10    # below this, pipelining buys nothing

    sublanes = {4: 8, 2: 16, 1: 32}.get(itemsize, 8)
    use_slab = (hw % 128 == 0) and (C < sublanes)

    if use_slab:
        # Lane-dense layout: (B, C, S, 128); channels on the slab axis.
        S = hw // 128
        yp = y_pred.reshape(B, C, S, 128)
        yt = y_true.reshape(B, C, S, 128)
        row_bytes = C * 128 * itemsize
        per_batch = S * row_bytes
        if per_batch <= min(single_tile_bytes, block_budget_bytes):
            s_tile = S
        else:
            by_budget = max(8, (block_budget_bytes // row_bytes) // 8 * 8)
            by_pipe = max(8, _ceil_to(_cdiv(S, 4), 8))   # keep >=4 tiles in flight
            s_tile = min(by_budget, by_pipe)
            if s_tile >= S:
                s_tile = S
        n_t = _cdiv(S, s_tile)
        needs_mask = (n_t * s_tile != S)
        block = (1, C, s_tile, 128)
        index_map = lambda b, t: (b, 0, t, 0)
        ch_axis, mask_axis, valid, lane = 1, (2 if needs_mask else None), S, 128
    else:
        # Channel-on-sublane layout: (B, 1, C, HW); ragged last tile is masked
        # in-kernel instead of padding in HBM.
        yp = y_pred.reshape(B, 1, C, hw)
        yt = y_true.reshape(B, 1, C, hw)
        col_bytes = C * itemsize
        budget = max(128 * col_bytes, block_budget_bytes // 2)
        per_batch = hw * col_bytes
        if per_batch <= min(single_tile_bytes, budget):
            hw_tile = hw
        else:
            by_budget = max(128, (budget // col_bytes) // 128 * 128)
            by_pipe = max(128, _ceil_to(_cdiv(hw, 4), 128))
            hw_tile = min(by_budget, by_pipe)
            if hw_tile >= hw:
                hw_tile = hw
        n_t = _cdiv(hw, hw_tile)
        needs_mask = (n_t * hw_tile != hw)
        block = (1, 1, C, hw_tile)
        index_map = lambda b, t: (b, 0, 0, t)
        ch_axis, mask_axis, valid, lane = 2, (3 if needs_mask else None), hw, hw_tile

    kernel = functools.partial(
        _combined_loss_kernel,
        gamma=float(gamma), inv_n=1.0 / float(n_elems),
        ch_axis=ch_axis, mask_axis=mask_axis, valid_extent=valid)

    out = pl.pallas_call(
        kernel,
        out_shape=jax.ShapeDtypeStruct((B, 1, 1), jnp.float32),
        grid_spec=pltpu.PrefetchScalarGridSpec(
            num_scalar_prefetch=0,
            grid=(B, n_t),
            in_specs=[pl.BlockSpec(block, index_map),
                      pl.BlockSpec(block, index_map)],
            out_specs=pl.BlockSpec((1, 1, 1), lambda b, t: (b, 0, 0)),
            scratch_shapes=[pltpu.VMEM((1, 8, lane), jnp.float32)],
        ),
        compiler_params=pltpu.CompilerParams(
            dimension_semantics=("parallel", "arbitrary"),
            vmem_limit_bytes=vmem_limit,
        ),
    )(yp, yt)

    # TODO(synk): when B == 1 on v7x, add an optional 2-way split of the spatial
    # range (kernel emits per-split raw moments, wrapper merges) so the second
    # TensorCore gets work.
    return jnp.mean(out[:, 0, 0])


def combined_loss_ref(y_pred, y_true, gamma=0.1):
    """Pure-JAX reference mirroring the PyTorch module."""
    B = y_pred.shape[0]
    log_p = jax.nn.log_softmax(y_pred, axis=1)
    t = jax.nn.softmax(y_true, axis=1)
    l_kl = jnp.sum(t * (jnp.log(t) - log_p)) / B
    yp_mean = jnp.mean(y_pred, axis=(1, 2, 3), keepdims=True)
    yt_mean = jnp.mean(y_true, axis=(1, 2, 3), keepdims=True)
    pc = y_pred - yp_mean
    tc = y_true - yt_mean
    corr = jnp.sum(pc * tc, axis=(1, 2, 3))
    std_p = jnp.sqrt(jnp.sum(pc ** 2, axis=(1, 2, 3)) + 1e-6)
    std_t = jnp.sqrt(jnp.sum(tc ** 2, axis=(1, 2, 3)) + 1e-6)
    l_cc = -corr / (std_p * std_t + 1e-6)
    return jnp.mean(gamma * l_kl + l_cc)


if __name__ == "__main__":
    key = jax.random.PRNGKey(0)
    k = jax.random.split(key, 8)

    def check(yp, yt, **kw):
        got = jax.block_until_ready(combined_loss(yp, yt, gamma=0.1, **kw))
        want = jax.block_until_ready(combined_loss_ref(yp, yt, gamma=0.1))
        assert jnp.isfinite(got), got
        assert jnp.allclose(got, want, rtol=2e-4, atol=2e-5), (got, want)
        return got

    # Primary shape: lane-dense slab layout, single spatial tile per batch.
    y_pred = jax.random.normal(k[0], (2, 4, 16, 16), dtype=jnp.float32)
    y_true = jax.random.normal(k[1], (2, 4, 16, 16), dtype=jnp.float32)
    check(y_pred, y_true)

    # Large constant offsets: exercises the pilot-centered moment accumulation.
    check(y_pred + 100.0, y_true - 50.0)

    # Non-lane-multiple spatial extent: channel-on-sublane path, no HBM padding.
    yp2 = jax.random.normal(k[2], (2, 4, 10, 10), dtype=jnp.float32)
    yt2 = jax.random.normal(k[3], (2, 4, 10, 10), dtype=jnp.float32)
    check(yp2, yt2)

    # Forced multi-tile slab path with a masked (partial) last spatial tile.
    yp3 = jax.random.normal(k[4], (2, 4, 40, 32), dtype=jnp.float32)
    yt3 = jax.random.normal(k[5], (2, 4, 40, 32), dtype=jnp.float32)
    check(yp3, yt3, block_budget_bytes=16 * 1024, single_tile_bytes=0)

    # Forced multi-tile channel-on-sublane path with a masked last lane tile.
    yp4 = jax.random.normal(k[6], (2, 4, 20, 20), dtype=jnp.float32)
    yt4 = jax.random.normal(k[7], (2, 4, 20, 20), dtype=jnp.float32)
    check(yp4, yt4, block_budget_bytes=4 * 1024, single_tile_bytes=0)

    print("KERNEL_OK")
</pallas_src>

<mosaic_0001>
module attributes {stable_mosaic.version = 11 : i64} {
  func.func @_combined_loss_kernel(%arg0: i32, %arg1: i32, %arg2: memref<1x4x2x128xf32, #tpu.memory_space<vmem>>, %arg3: memref<1x4x2x128xf32, #tpu.memory_space<vmem>>, %arg4: memref<1x1x1xf32, #tpu.memory_space<vmem>>, %arg5: memref<1x8x128xf32, #tpu.memory_space<vmem>>) attributes {dimension_semantics = [#tpu.dimension_semantics<parallel>, #tpu.dimension_semantics<arbitrary>], iteration_bounds = array<i64: 2, 1>, scalar_prefetch = 0 : i64, scratch_operands = 1 : i64, tpu.core_type = #tpu.core_type<tc>, window_params = [{transform_indices = @transform_0, window_bounds = array<i64: 1, 4, 2, 128>}, {transform_indices = @transform_1, window_bounds = array<i64: 1, 4, 2, 128>}, {transform_indices = @transform_2, window_bounds = array<i64: 1, 1, 1>}]} {
    %c0 = arith.constant 0 : index
    %c0_0 = arith.constant 0 : index
    %c0_1 = arith.constant 0 : index
    %c0_2 = arith.constant 0 : index
    %0 = vector.load %arg2[%c0, %c0_0, %c0_1, %c0_2] : memref<1x4x2x128xf32, #tpu.memory_space<vmem>>, vector<1x4x2x128xf32>
    %c0_3 = arith.constant 0 : index
    %c0_4 = arith.constant 0 : index
    %c0_5 = arith.constant 0 : index
    %c0_6 = arith.constant 0 : index
    %1 = vector.load %arg3[%c0_3, %c0_4, %c0_5, %c0_6] : memref<1x4x2x128xf32, #tpu.memory_space<vmem>>, vector<1x4x2x128xf32>
    %c0_i32 = arith.constant 0 : i32
    %2 = arith.cmpi eq, %arg1, %c0_i32 : i32
    %3 = arith.extui %2 : i1 to i32
    %c0_i32_7 = arith.constant 0 : i32
    %4 = arith.cmpi ne, %3, %c0_i32_7 : i32
    scf.if %4 {
      %cst_55 = arith.constant 0.000000e+00 : f32
      %72 = vector.broadcast %cst_55 : f32 to vector<1x8x128xf32>
      %c0_56 = arith.constant 0 : index
      %c0_57 = arith.constant 0 : index
      %c0_58 = arith.constant 0 : index
      %73 = vector.load %arg5[%c0_56, %c0_57, %c0_58] : memref<1x8x128xf32, #tpu.memory_space<vmem>>, vector<1x8x128xf32>
      tpu.vector_store %arg5[%c0_56, %c0_57, %c0_58], %72 {strides = array<i32>} : memref<1x8x128xf32, #tpu.memory_space<vmem>>, vector<1x8x128xf32>,
      %cst_59 = arith.constant dense<0.000000e+00> : vector<1xf32>
      %74 = vector.multi_reduction <add>, %0, %cst_59 [1, 2, 3] : vector<1x4x2x128xf32> to vector<1xf32>
      %75 = vector.shape_cast %74 : vector<1xf32> to vector<1x1x1x1xf32>
      %76 = vector.shape_cast %75 : vector<1x1x1x1xf32> to vector<1x1x1xf32>
      %cst_60 = arith.constant 9.765625E-4 : f32
      %77 = vector.broadcast %cst_60 : f32 to vector<1x1x1xf32>
      %78 = arith.mulf %76, %77 : vector<1x1x1xf32>
      %cst_61 = arith.constant dense<0.000000e+00> : vector<1xf32>
      %79 = vector.multi_reduction <add>, %1, %cst_61 [1, 2, 3] : vector<1x4x2x128xf32> to vector<1xf32>
      %80 = vector.shape_cast %79 : vector<1xf32> to vector<1x1x1x1xf32>
      %81 = vector.shape_cast %80 : vector<1x1x1x1xf32> to vector<1x1x1xf32>
      %cst_62 = arith.constant 9.765625E-4 : f32
      %82 = vector.broadcast %cst_62 : f32 to vector<1x1x1xf32>
      %83 = arith.mulf %81, %82 : vector<1x1x1xf32>
      %84 = vector.shape_cast %78 : vector<1x1x1xf32> to vector<1x1x1xf32>
      %85 = vector.broadcast %84 : vector<1x1x1xf32> to vector<1x1x128xf32>
      %c0_63 = arith.constant 0 : index
      %c6_64 = arith.constant 6 : index
      %c0_65 = arith.constant 0 : index
      %86 = vector.load %arg5[%c0_63, %c6_64, %c0_65] : memref<1x8x128xf32, #tpu.memory_space<vmem>>, vector<1x1x128xf32>
      tpu.vector_store %arg5[%c0_63, %c6_64, %c0_65], %85 {strides = array<i32>} : memref<1x8x128xf32, #tpu.memory_space<vmem>>, vector<1x1x128xf32>,
      %87 = vector.shape_cast %83 : vector<1x1x1xf32> to vector<1x1x1xf32>
      %88 = vector.broadcast %87 : vector<1x1x1xf32> to vector<1x1x128xf32>
      %c0_66 = arith.constant 0 : index
      %c7_67 = arith.constant 7 : index
      %c0_68 = arith.constant 0 : index
      %89 = vector.load %arg5[%c0_66, %c7_67, %c0_68] : memref<1x8x128xf32, #tpu.memory_space<vmem>>, vector<1x1x128xf32>
      tpu.vector_store %arg5[%c0_66, %c7_67, %c0_68], %88 {strides = array<i32>} : memref<1x8x128xf32, #tpu.memory_space<vmem>>, vector<1x1x128xf32>,
    } else {
    }
    %c0_8 = arith.constant 0 : index
    %c6 = arith.constant 6 : index
    %c0_9 = arith.constant 0 : index
    %5 = vector.load %arg5[%c0_8, %c6, %c0_9] : memref<1x8x128xf32, #tpu.memory_space<vmem>>, vector<1x1x128xf32>
    %6 = vector.shape_cast %5 : vector<1x1x128xf32> to vector<1x1x1x128xf32>
    %c0_10 = arith.constant 0 : index
    %c7 = arith.constant 7 : index
    %c0_11 = arith.constant 0 : index
    %7 = vector.load %arg5[%c0_10, %c7, %c0_11] : memref<1x8x128xf32, #tpu.memory_space<vmem>>, vector<1x1x128xf32>
    %8 = vector.shape_cast %7 : vector<1x1x128xf32> to vector<1x1x1x128xf32>
    %9 = vector.broadcast %6 : vector<1x1x1x128xf32> to vector<1x4x2x128xf32>
    %10 = arith.subf %0, %9 : vector<1x4x2x128xf32>
    %11 = vector.broadcast %8 : vector<1x1x1x128xf32> to vector<1x4x2x128xf32>
    %12 = arith.subf %1, %11 : vector<1x4x2x128xf32>
    %cst = arith.constant dense<0xFF800000> : vector<1x2x128xf32>
    %13 = vector.multi_reduction <maximumf>, %10, %cst [1] : vector<1x4x2x128xf32> to vector<1x2x128xf32>
    %14 = vector.shape_cast %13 : vector<1x2x128xf32> to vector<1x1x2x128xf32>
    %15 = vector.broadcast %14 : vector<1x1x2x128xf32> to vector<1x4x2x128xf32>
    %16 = arith.subf %10, %15 : vector<1x4x2x128xf32>
    %cst_12 = arith.constant dense<0xFF800000> : vector<1x2x128xf32>
    %17 = vector.multi_reduction <maximumf>, %12, %cst_12 [1] : vector<1x4x2x128xf32> to vector<1x2x128xf32>
    %18 = vector.shape_cast %17 : vector<1x2x128xf32> to vector<1x1x2x128xf32>
    %19 = vector.broadcast %18 : vector<1x1x2x128xf32> to vector<1x4x2x128xf32>
    %20 = arith.subf %12, %19 : vector<1x4x2x128xf32>
    %21 = math.exp %16 : vector<1x4x2x128xf32>
    %22 = math.exp %20 : vector<1x4x2x128xf32>
    %cst_13 = arith.constant dense<0.000000e+00> : vector<1x2x128xf32>
    %23 = vector.multi_reduction <add>, %21, %cst_13 [1] : vector<1x4x2x128xf32> to vector<1x2x128xf32>
    %24 = vector.shape_cast %23 : vector<1x2x128xf32> to vector<1x1x2x128xf32>
    %cst_14 = arith.constant dense<0.000000e+00> : vector<1x2x128xf32>
    %25 = vector.multi_reduction <add>, %22, %cst_14 [1] : vector<1x4x2x128xf32> to vector<1x2x128xf32>
    %26 = vector.shape_cast %25 : vector<1x2x128xf32> to vector<1x1x2x128xf32>
    %27 = arith.subf %20, %16 : vector<1x4x2x128xf32>
    %28 = arith.mulf %22, %27 : vector<1x4x2x128xf32>
    %cst_15 = arith.constant dense<0.000000e+00> : vector<1x2x128xf32>
    %29 = vector.multi_reduction <add>, %28, %cst_15 [1] : vector<1x4x2x128xf32> to vector<1x2x128xf32>
    %30 = vector.shape_cast %29 : vector<1x2x128xf32> to vector<1x1x2x128xf32>
    %31 = arith.divf %30, %26 : vector<1x1x2x128xf32>
    %32 = math.log %24 : vector<1x1x2x128xf32>
    %33 = math.log %26 : vector<1x1x2x128xf32>
    %34 = arith.subf %32, %33 : vector<1x1x2x128xf32>
    %35 = arith.addf %31, %34 : vector<1x1x2x128xf32>
    %c0_16 = arith.constant 0 : index
    %c0_17 = arith.constant 0 : index
    %c0_18 = arith.constant 0 : index
    %36 = vector.load %arg5[%c0_16, %c0_17, %c0_18] : memref<1x8x128xf32, #tpu.memory_space<vmem>>, vector<1x1x128xf32>
    %cst_19 = arith.constant dense<0.000000e+00> : vector<1x128xf32>
    %37 = vector.multi_reduction <add>, %35, %cst_19 [1, 2] : vector<1x1x2x128xf32> to vector<1x128xf32>
    %38 = vector.shape_cast %37 : vector<1x128xf32> to vector<1x1x128xf32>
    %39 = arith.addf %36, %38 : vector<1x1x128xf32>
    %c0_20 = arith.constant 0 : index
    %c0_21 = arith.constant 0 : index
    %c0_22 = arith.constant 0 : index
    %40 = vector.load %arg5[%c0_20, %c0_21, %c0_22] : memref<1x8x128xf32, #tpu.memory_space<vmem>>, vector<1x1x128xf32>
    tpu.vector_store %arg5[%c0_20, %c0_21, %c0_22], %39 {strides = array<i32>} : memref<1x8x128xf32, #tpu.memory_space<vmem>>, vector<1x1x128xf32>,
    %c0_23 = arith.constant 0 : index
    %c1 = arith.constant 1 : index
    %c0_24 = arith.constant 0 : index
    %41 = vector.load %arg5[%c0_23, %c1, %c0_24] : memref<1x8x128xf32, #tpu.memory_space<vmem>>, vector<1x1x128xf32>
    %cst_25 = arith.constant dense<0.000000e+00> : vector<1x128xf32>
    %42 = vector.multi_reduction <add>, %10, %cst_25 [1, 2] : vector<1x4x2x128xf32> to vector<1x128xf32>
    %43 = vector.shape_cast %42 : vector<1x128xf32> to vector<1x1x128xf32>
    %44 = arith.addf %41, %43 : vector<1x1x128xf32>
    %c0_26 = arith.constant 0 : index
    %c1_27 = arith.constant 1 : index
    %c0_28 = arith.constant 0 : index
    %45 = vector.load %arg5[%c0_26, %c1_27, %c0_28] : memref<1x8x128xf32, #tpu.memory_space<vmem>>, vector<1x1x128xf32>
    tpu.vector_store %arg5[%c0_26, %c1_27, %c0_28], %44 {strides = array<i32>} : memref<1x8x128xf32, #tpu.memory_space<vmem>>, vector<1x1x128xf32>,
    %c0_29 = arith.constant 0 : index
    %c2 = arith.constant 2 : index
    %c0_30 = arith.constant 0 : index
    %46 = vector.load %arg5[%c0_29, %c2, %c0_30] : memref<1x8x128xf32, #tpu.memory_space<vmem>>, vector<1x1x128xf32>
    %cst_31 = arith.constant dense<0.000000e+00> : vector<1x128xf32>
    %47 = vector.multi_reduction <add>, %12, %cst_31 [1, 2] : vector<1x4x2x128xf32> to vector<1x128xf32>
    %48 = vector.shape_cast %47 : vector<1x128xf32> to vector<1x1x128xf32>
    %49 = arith.addf %46, %48 : vector<1x1x128xf32>
    %c0_32 = arith.constant 0 : index
    %c2_33 = arith.constant 2 : index
    %c0_34 = arith.constant 0 : index
    %50 = vector.load %arg5[%c0_32, %c2_33, %c0_34] : memref<1x8x128xf32, #tpu.memory_space<vmem>>, vector<1x1x128xf32>
    tpu.vector_store %arg5[%c0_32, %c2_33, %c0_34], %49 {strides = array<i32>} : memref<1x8x128xf32, #tpu.memory_space<vmem>>, vector<1x1x128xf32>,
    %c0_35 = arith.constant 0 : index
    %c3 = arith.constant 3 : index
    %c0_36 = arith.constant 0 : index
    %51 = vector.load %arg5[%c0_35, %c3, %c0_36] : memref<1x8x128xf32, #tpu.memory_space<vmem>>, vector<1x1x128xf32>
    %52 = arith.mulf %10, %12 : vector<1x4x2x128xf32>
    %cst_37 = arith.constant dense<0.000000e+00> : vector<1x128xf32>
    %53 = vector.multi_reduction <add>, %52, %cst_37 [1, 2] : vector<1x4x2x128xf32> to vector<1x128xf32>
    %54 = vector.shape_cast %53 : vector<1x128xf32> to vector<1x1x128xf32>
    %55 = arith.addf %51, %54 : vector<1x1x128xf32>
    %c0_38 = arith.constant 0 : index
    %c3_39 = arith.constant 3 : index
    %c0_40 = arith.constant 0 : index
    %56 = vector.load %arg5[%c0_38, %c3_39, %c0_40] : memref<1x8x128xf32, #tpu.memory_space<vmem>>, vector<1x1x128xf32>
    tpu.vector_store %arg5[%c0_38, %c3_39, %c0_40], %55 {strides = array<i32>} : memref<1x8x128xf32, #tpu.memory_space<vmem>>, vector<1x1x128xf32>,
    %c0_41 = arith.constant 0 : index
    %c4 = arith.constant 4 : index
    %c0_42 = arith.constant 0 : index
    %57 = vector.load %arg5[%c0_41, %c4, %c0_42] : memref<1x8x128xf32, #tpu.memory_space<vmem>>, vector<1x1x128xf32>
    %58 = arith.mulf %10, %10 : vector<1x4x2x128xf32>
    %cst_43 = arith.constant dense<0.000000e+00> : vector<1x128xf32>
    %59 = vector.multi_reduction <add>, %58, %cst_43 [1, 2] : vector<1x4x2x128xf32> to vector<1x128xf32>
    %60 = vector.shape_cast %59 : vector<1x128xf32> to vector<1x1x128xf32>
    %61 = arith.addf %57, %60 : vector<1x1x128xf32>
    %c0_44 = arith.constant 0 : index
    %c4_45 = arith.constant 4 : index
    %c0_46 = arith.constant 0 : index
    %62 = vector.load %arg5[%c0_44, %c4_45, %c0_46] : memref<1x8x128xf32, #tpu.memory_space<vmem>>, vector<1x1x128xf32>
    tpu.vector_store %arg5[%c0_44, %c4_45, %c0_46], %61 {strides = array<i32>} : memref<1x8x128xf32, #tpu.memory_space<vmem>>, vector<1x1x128xf32>,
    %c0_47 = arith.constant 0 : index
    %c5 = arith.constant 5 : index
    %c0_48 = arith.constant 0 : index
    %63 = vector.load %arg5[%c0_47, %c5, %c0_48] : memref<1x8x128xf32, #tpu.memory_space<vmem>>, vector<1x1x128xf32>
    %64 = arith.mulf %12, %12 : vector<1x4x2x128xf32>
    %cst_49 = arith.constant dense<0.000000e+00> : vector<1x128xf32>
    %65 = vector.multi_reduction <add>, %64, %cst_49 [1, 2] : vector<1x4x2x128xf32> to vector<1x128xf32>
    %66 = vector.shape_cast %65 : vector<1x128xf32> to vector<1x1x128xf32>
    %67 = arith.addf %63, %66 : vector<1x1x128xf32>
    %c0_50 = arith.constant 0 : index
    %c5_51 = arith.constant 5 : index
    %c0_52 = arith.constant 0 : index
    %68 = vector.load %arg5[%c0_50, %c5_51, %c0_52] : memref<1x8x128xf32, #tpu.memory_space<vmem>>, vector<1x1x128xf32>
    tpu.vector_store %arg5[%c0_50, %c5_51, %c0_52], %67 {strides = array<i32>} : memref<1x8x128xf32, #tpu.memory_space<vmem>>, vector<1x1x128xf32>,
    %c0_i32_53 = arith.constant 0 : i32
    %69 = arith.cmpi eq, %arg1, %c0_i32_53 : i32
    %70 = arith.extui %69 : i1 to i32
    %c0_i32_54 = arith.constant 0 : i32
    %71 = arith.cmpi ne, %70, %c0_i32_54 : i32
    scf.if %71 {
      %c0_55 = arith.constant 0 : index
      %c0_56 = arith.constant 0 : index
      %c0_57 = arith.constant 0 : index
      %72 = vector.load %arg5[%c0_55, %c0_56, %c0_57] : memref<1x8x128xf32, #tpu.memory_space<vmem>>, vector<1x8x128xf32>
      %cst_58 = arith.constant dense<0.000000e+00> : vector<1x8xf32>
      %73 = vector.multi_reduction <add>, %72, %cst_58 [2] : vector<1x8x128xf32> to vector<1x8xf32>
      %74 = vector.shape_cast %73 : vector<1x8xf32> to vector<1x8x1xf32>
      %75 = vector.extract_strided_slice %74 {offsets = [0, 0, 0], sizes = [1, 1, 1], strides = [1, 1, 1]} : vector<1x8x1xf32> to vector<1x1x1xf32>
      %76 = vector.extract_strided_slice %74 {offsets = [0, 1, 0], sizes = [1, 1, 1], strides = [1, 1, 1]} : vector<1x8x1xf32> to vector<1x1x1xf32>
      %77 = vector.extract_strided_slice %74 {offsets = [0, 2, 0], sizes = [1, 1, 1], strides = [1, 1, 1]} : vector<1x8x1xf32> to vector<1x1x1xf32>
      %78 = vector.extract_strided_slice %74 {offsets = [0, 3, 0], sizes = [1, 1, 1], strides = [1, 1, 1]} : vector<1x8x1xf32> to vector<1x1x1xf32>
      %79 = vector.extract_strided_slice %74 {offsets = [0, 4, 0], sizes = [1, 1, 1], strides = [1, 1, 1]} : vector<1x8x1xf32> to vector<1x1x1xf32>
      %80 = vector.extract_strided_slice %74 {offsets = [0, 5, 0], sizes = [1, 1, 1], strides = [1, 1, 1]} : vector<1x8x1xf32> to vector<1x1x1xf32>
      %81 = arith.mulf %76, %77 : vector<1x1x1xf32>
      %cst_59 = arith.constant 9.765625E-4 : f32
      %82 = vector.broadcast %cst_59 : f32 to vector<1x1x1xf32>
      %83 = arith.mulf %81, %82 : vector<1x1x1xf32>
      %84 = arith.subf %78, %83 : vector<1x1x1xf32>
      %85 = arith.mulf %76, %76 : vector<1x1x1xf32>
      %cst_60 = arith.constant 9.765625E-4 : f32
      %86 = vector.broadcast %cst_60 : f32 to vector<1x1x1xf32>
      %87 = arith.mulf %85, %86 : vector<1x1x1xf32>
      %88 = arith.subf %79, %87 : vector<1x1x1xf32>
      %89 = arith.mulf %77, %77 : vector<1x1x1xf32>
      %cst_61 = arith.constant 9.765625E-4 : f32
      %90 = vector.broadcast %cst_61 : f32 to vector<1x1x1xf32>
      %91 = arith.mulf %89, %90 : vector<1x1x1xf32>
      %92 = arith.subf %80, %91 : vector<1x1x1xf32>
      %cst_62 = arith.constant 9.99999997E-7 : f32
      %93 = vector.broadcast %cst_62 : f32 to vector<1x1x1xf32>
      %94 = arith.addf %88, %93 : vector<1x1x1xf32>
      %95 = math.sqrt %94 : vector<1x1x1xf32>
      %cst_63 = arith.constant 9.99999997E-7 : f32
      %96 = vector.broadcast %cst_63 : f32 to vector<1x1x1xf32>
      %97 = arith.addf %92, %96 : vector<1x1x1xf32>
      %98 = math.sqrt %97 : vector<1x1x1xf32>
      %cst_64 = arith.constant 0.000000e+00 : f32
      %99 = vector.broadcast %cst_64 : f32 to vector<1x1x1xf32>
      %100 = arith.subf %99, %84 : vector<1x1x1xf32>
      %101 = arith.mulf %95, %98 : vector<1x1x1xf32>
      %cst_65 = arith.constant 9.99999997E-7 : f32
      %102 = vector.broadcast %cst_65 : f32 to vector<1x1x1xf32>
      %103 = arith.addf %101, %102 : vector<1x1x1xf32>
      %104 = arith.divf %100, %103 : vector<1x1x1xf32>
      %cst_66 = arith.constant 1.000000e-01 : f32
      %105 = vector.broadcast %cst_66 : f32 to vector<1x1x1xf32>
      %106 = arith.mulf %105, %75 : vector<1x1x1xf32>
      %107 = arith.addf %106, %104 : vector<1x1x1xf32>
      %c0_67 = arith.constant 0 : index
      %c0_68 = arith.constant 0 : index
      %c0_69 = arith.constant 0 : index
      %108 = vector.load %arg4[%c0_67, %c0_68, %c0_69] : memref<1x1x1xf32, #tpu.memory_space<vmem>>, vector<1x1x1xf32>
      tpu.vector_store %arg4[%c0_67, %c0_68, %c0_69], %107 {strides = array<i32>} : memref<1x1x1xf32, #tpu.memory_space<vmem>>, vector<1x1x1xf32>,
    } else {
    }
    return
  }
  func.func @transform_0(%arg0: i32, %arg1: i32) -> (i32, i32, i32, i32) {
    %c0_i32 = arith.constant 0 : i32
    %c0_i32_0 = arith.constant 0 : i32
    %c0_i32_1 = arith.constant 0 : i32
    return %arg0, %c0_i32, %arg1, %c0_i32_0 : i32, i32, i32, i32
  }
  func.func @transform_1(%arg0: i32, %arg1: i32) -> (i32, i32, i32, i32) {
    %c0_i32 = arith.constant 0 : i32
    %c0_i32_0 = arith.constant 0 : i32
    %c0_i32_1 = arith.constant 0 : i32
    return %arg0, %c0_i32, %arg1, %c0_i32_0 : i32, i32, i32, i32
  }
  func.func @transform_2(%arg0: i32, %arg1: i32) -> (i32, i32, i32) {
    %c0_i32 = arith.constant 0 : i32
    %c0_i32_0 = arith.constant 0 : i32
    %c0_i32_1 = arith.constant 0 : i32
    return %arg0, %c0_i32, %c0_i32_0 : i32, i32, i32
  }
}

</mosaic_0001>

<llo_original>
// kernel: tpu_custom_call.1
$region0: #{tpu_custom_call.1}
  #allocation0 [shape = 'u32[]', space=smem, size = 0x4, offset = 0x4, fixed_abs, tag = 'smem constant byte address 0x4 - core index']
  #allocation1 [shape = 'u32[144,128]{1,0:T(1,128)}', space=vmem, size = 0x12000, scoped, tag = 'internal scratch']
  #allocation2 [shape = 'f32[1,8,128]{2,1,0:T(8,128)}', space=vmem, size = 0x1000, scoped, tag = 'scratch operand']
  %s0 = inlined_call_operand.hbm [shape: f32[2,4,2,128], index: 0, kind: input, shape index: {}]
  %s1 = inlined_call_operand.hbm [shape: f32[2,4,2,128], index: 1, kind: input, shape index: {}]
  %s2 = inlined_call_operand.vmem [shape: f32[2,1,1], index: 2, kind: output, shape index: {}]
  %s3 = sld [smem:[#allocation0]]
  $region57: #{tpu_custom_call.1} parent=0
    _
  %s5 = ssub.s32 1, %s3
  %s6 = scalar_select 0, %s5, %s3
  $region1: #{tpu_custom_call.1} parent=0
    #allocation3 [shape = 'u8[8192]{0}', space=vmem, size = 0x2000, scoped, tag = 'input window, operand 0']
    #allocation4 [shape = 's32[2]{0}', space=sflag, size = 0x8, scoped, tag = 'scoped memory for tpu_custom_call.1']
    #allocation5 [shape = 'u8[8192]{0}', space=vmem, size = 0x2000, scoped, tag = 'input window, operand 1']
    #allocation6 [shape = 's32[2]{0}', space=sflag, size = 0x8, scoped, tag = 'scoped memory for tpu_custom_call.1']
    %7 = vsyncpa [#allocation4], 0
    %s8 = scalar_lea.sflag [#allocation4], 1
    %9 = vsyncpa %s8, 0
    %10 = vsyncpa [#allocation6], 0
    %s11 = scalar_lea.sflag [#allocation6], 1
    %12 = vsyncpa %s11, 0
    loop: start=0, step=1, limit=4
    $region2: #{tpu_custom_call.1} parent=1 // loop_pre_header
      _
    $region3: #{tpu_custom_call.1} parent=1 // loop_header
      %s14 = sphi 0, %s18
      %p15 = scmp.ge.s32.totalorder %s14, 4
      %s21 = sphi 0, %s33
      %s22 = sphi 0, %s29
      %s23 = sphi 0, %s21
      %s24 = sphi 0, %s22
      %s25 = sphi 0, %s23
      %s26 = sphi 0, %s24
      %s38 = sphi 0, %s40
      %s41 = sphi 0, %s38
      %s42 = sphi 0, %s41
      %s58 = sphi 0, %s42
      %s66 = sphi 0, %s68
      %s69 = sphi 0, %s66
      %s70 = sphi 0, %s69
      %s86 = sphi 0, %s70
      %s92 = sphi 0, %s94
      %s95 = sphi 0, %s92
      %s96 = sphi 0, %s95
      %s112 = sphi 0, %s96
    $region4: #{tpu_custom_call.1} parent=1 // loop_header_branch
      %17 = sbr.rel (%p15) target = $region8
    $region5: #{tpu_custom_call.1} parent=1 // loop_body
      %s19 = ssub.s32 %s14, 1
      %s20 = ssub.s32 %s14, 2
      %s27 = sadd.s32 1, %s22
      %p28 = scmp.ge.s32.totalorder %s27, 1
      %s29 = scalar_select %p28, 0, %s27
      %s30 = sadd.s32 1, %s21
      %s31 = scalar_select %p28, %s30, %s21
      %p32 = scmp.ge.s32.totalorder %s31, 2
      %s33 = scalar_select %p32, 0, %s31
      %s34 = ssub.s32 %s21, %s33
      %s35 = ssub.s32 %s22, %s29
      %s36 = sor.u32 %s34, %s35
      %p37 = scmp.eq.s32.totalorder %s36, 0
      %s39 = sadd.s32 %s38, 1
      %s40 = scalar_select %p37, %s38, %s39
      %p43 = pneg %p37
      %p44 = scmp.eq.s32.totalorder %s14, 1
      %p45 = por %p43, %p44
      %p46 = scmp.ne.s32.totalorder %s38, %s41
      %p47 = scmp.eq.s32.totalorder %s14, 0
      %p48 = por %p46, %p47
      %p49 = scmp.ne.s32.totalorder %s38, %s41
      %p50 = scmp.eq.s32.totalorder %s19, 1
      %p51 = por %p49, %p50
      %p52 = scmp.ne.s32.totalorder %s41, %s42
      %p53 = scmp.eq.s32.totalorder %s19, 0
      %p54 = por %p52, %p53
      %p55 = scmp.ne.s32.totalorder %s41, %s42
      %p56 = scmp.eq.s32.totalorder %s20, 1
      %p57 = por %p55, %p56
      %p59 = scmp.ne.s32.totalorder %s42, %s58
      %p60 = scmp.eq.s32.totalorder %s20, 0
      %p61 = por %p59, %p60
      %s62 = ssub.s32 %s21, %s33
      %s63 = ssub.s32 %s22, %s29
      %s64 = sor.u32 %s62, %s63
      %p65 = scmp.eq.s32.totalorder %s64, 0
      %s67 = sadd.s32 %s66, 1
      %s68 = scalar_select %p65, %s66, %s67
      %p71 = pneg %p65
      %p72 = scmp.eq.s32.totalorder %s14, 1
      %p73 = por %p71, %p72
      %p74 = scmp.ne.s32.totalorder %s66, %s69
      %p75 = scmp.eq.s32.totalorder %s14, 0
      %p76 = por %p74, %p75
      %p77 = scmp.ne.s32.totalorder %s66, %s69
      %p78 = scmp.eq.s32.totalorder %s19, 1
      %p79 = por %p77, %p78
      %p80 = scmp.ne.s32.totalorder %s69, %s70
      %p81 = scmp.eq.s32.totalorder %s19, 0
      %p82 = por %p80, %p81
      %p83 = scmp.ne.s32.totalorder %s69, %s70
      %p84 = scmp.eq.s32.totalorder %s20, 1
      %p85 = por %p83, %p84
      %p87 = scmp.ne.s32.totalorder %s70, %s86
      %p88 = scmp.eq.s32.totalorder %s20, 0
      %p89 = por %p87, %p88
      %s90 = ssub.s32 %s21, %s33
      %p91 = scmp.eq.s32.totalorder %s90, 0
      %s93 = sadd.s32 %s92, 1
      %s94 = scalar_select %p91, %s92, %s93
      %p97 = pneg %p91
      %p98 = scmp.eq.s32.totalorder %s14, 1
      %p99 = por %p97, %p98
      %p100 = scmp.ne.s32.totalorder %s92, %s95
      %p101 = scmp.eq.s32.totalorder %s14, 0
      %p102 = por %p100, %p101
      %p103 = scmp.ne.s32.totalorder %s92, %s95
      %p104 = scmp.eq.s32.totalorder %s19, 1
      %p105 = por %p103, %p104
      %p106 = scmp.ne.s32.totalorder %s95, %s96
      %p107 = scmp.eq.s32.totalorder %s19, 0
      %p108 = por %p106, %p107
      %p109 = scmp.ne.s32.totalorder %s95, %s96
      %p110 = scmp.eq.s32.totalorder %s20, 1
      %p111 = por %p109, %p110
      %p113 = scmp.ne.s32.totalorder %s96, %s112
      %p114 = scmp.eq.s32.totalorder %s20, 0
      %p115 = por %p113, %p114
      %p116 = scmp.le.s32.totalorder 1, %s14
      %p117 = scmp.lt.s32.totalorder %s14, 3
      %p118 = pnand %p116, %p117
      %p119 = pneg %p118
      // Predicated region
      $region9: #{tpu_custom_call.1} parent=5 // pred_check
        _
      $region10: #{tpu_custom_call.1} parent=5 // pred_check_branch
        %121 = sbr.rel (%p118) target = $region12
      $region11: #{tpu_custom_call.1} parent=5 // pred_region
        %s122 = ssub.s32 %s14, 1
      $region12: #{tpu_custom_call.1} parent=5 // pred_fallthru
        _
      %p123 = scmp.lt.s32.totalorder %s14, 2
      // Predicated region
      $region13: #{tpu_custom_call.1} parent=5 // pred_check
        %p124 = pneg %p123
      $region14: #{tpu_custom_call.1} parent=5 // pred_check_branch
        %126 = sbr.rel (%p124) target = $region16
      $region15: #{tpu_custom_call.1} parent=5 // pred_region
        // Predicated region
        $region17: #{tpu_custom_call.1} parent=15 // pred_check
          %p127 = pneg %p48
        $region18: #{tpu_custom_call.1} parent=15 // pred_check_branch
          %129 = sbr.rel (%p127) target = $region20
        $region19: #{tpu_custom_call.1} parent=15 // pred_region
          %s130 = sand.u32 %s38, 1
          %s131 = scalar_lea.sflag [#allocation4], %s130
          %s132 = sand.u32 %s38, 1
          %s133 = smul.addr %s132, 8
          %s134 = scalar_lea.vmem [#allocation3], %s133
          %s136 = ssub.s32 128, 128
          %137 = vsyncadd %s131, %s136
          %s138 = smul.addr %s21, 4
          %s139 = sadd.s32 %s22, %s138
          %s140 = smul.addr %s139, 32
          %s141 = scalar_lea.hbm %s0, %s140
          %s142 = sshll.u32 %s134, 4
          %s143 = int_to_ptr.vmem [resolvable:$true] %s142
          %148 = dma.hbm_to_vmem [thread:$0]  %s141, 128, %s143, %s131, 32, 32, 2
        $region20: #{tpu_custom_call.1} parent=15 // pred_fallthru
          _
        // Predicated region
        $region21: #{tpu_custom_call.1} parent=15 // pred_check
          %p149 = pneg %p76
        $region22: #{tpu_custom_call.1} parent=15 // pred_check_branch
          %151 = sbr.rel (%p149) target = $region24
        $region23: #{tpu_custom_call.1} parent=15 // pred_region
          %s152 = sand.u32 %s66, 1
          %s153 = scalar_lea.sflag [#allocation6], %s152
          %s154 = sand.u32 %s66, 1
          %s155 = smul.addr %s154, 8
          %s156 = scalar_lea.vmem [#allocation5], %s155
          %s158 = ssub.s32 128, 128
          %159 = vsyncadd %s153, %s158
          %s160 = smul.addr %s21, 4
          %s161 = sadd.s32 %s22, %s160
          %s162 = smul.addr %s161, 32
          %s163 = scalar_lea.hbm %s1, %s162
          %s164 = sshll.u32 %s156, 4
          %s165 = int_to_ptr.vmem [resolvable:$true] %s164
          %170 = dma.hbm_to_vmem [thread:$0]  %s163, 128, %s165, %s153, 32, 32, 2
        $region24: #{tpu_custom_call.1} parent=15 // pred_fallthru
          _
      $region16: #{tpu_custom_call.1} parent=5 // pred_fallthru
        _
      %p171 = scmp.le.s32.totalorder 1, %s14
      %p172 = scmp.lt.s32.totalorder %s14, 3
      %p173 = pnand %p171, %p172
      %p174 = pneg %p173
      // Predicated region
      $region25: #{tpu_custom_call.1} parent=5 // pred_check
        _
      $region26: #{tpu_custom_call.1} parent=5 // pred_check_branch
        %176 = sbr.rel (%p173) target = $region28
      $region27: #{tpu_custom_call.1} parent=5 // pred_region
        %s177 = ssub.s32 %s14, 1
        %s178 = sand.u32 %s41, 1
        %s179 = scalar_lea.sflag [#allocation4], %s178
        %s180 = sand.u32 %s41, 1
        %s181 = smul.addr %s180, 8
        %s182 = scalar_lea.vmem [#allocation3], %s181
        // Predicated region
        $region29: #{tpu_custom_call.1} parent=27 // pred_check
          %p183 = pneg %p54
        $region30: #{tpu_custom_call.1} parent=27 // pred_check_branch
          %185 = sbr.rel (%p183) target = $region32
        $region31: #{tpu_custom_call.1} parent=27 // pred_region
          %186 = dma.done %s179, 128
        $region32: #{tpu_custom_call.1} parent=27 // pred_fallthru
          _
        %s187 = sand.u32 %s69, 1
        %s188 = scalar_lea.sflag [#allocation6], %s187
        %s189 = sand.u32 %s69, 1
        %s190 = smul.addr %s189, 8
        %s191 = scalar_lea.vmem [#allocation5], %s190
        // Predicated region
        $region33: #{tpu_custom_call.1} parent=27 // pred_check
          %p192 = pneg %p82
        $region34: #{tpu_custom_call.1} parent=27 // pred_check_branch
          %194 = sbr.rel (%p192) target = $region36
        $region35: #{tpu_custom_call.1} parent=27 // pred_region
          %195 = dma.done %s188, 128
        $region36: #{tpu_custom_call.1} parent=27 // pred_fallthru
          _
        %s196 = sand.u32 %s41, 1
        %s197 = scalar_lea.sflag [#allocation4], %s196
        %s198 = sand.u32 %s41, 1
        %s199 = smul.addr %s198, 8
        %s200 = scalar_lea.vmem [#allocation3], %s199
        %p201 = pneg %p54
        %p202 = pneg %p51
        %s203 = sand.u32 %s69, 1
        %s204 = scalar_lea.sflag [#allocation6], %s203
        %s205 = sand.u32 %s69, 1
        %s206 = smul.addr %s205, 8
        %s207 = scalar_lea.vmem [#allocation5], %s206
        %p208 = pneg %p82
        %p209 = pneg %p79
        %p210 = pneg %p108
        %p211 = pneg %p105
        %p212 = scmp.lt.s32.totalorder %s23, 1
        %s213 = scalar_select %p212, %s23, 1
        %s214 = scalar_lea.vmem %s2, %s213
        %p215 = scmp.lt.s32.totalorder %s23, 1
        %s216 = scalar_select %p215, %s23, 1
        %s217 = scalar_lea.vmem %s2, %s216
        %v218 = vld [vmem:[%s182] sm:$0x3]
        %v219 = vld [vmem:[%s182 + $0x2] sm:$0x3]
        %v220 = vld [vmem:[%s182 + $0x4] sm:$0x3]
        %v221 = vld [vmem:[%s182 + $0x6] sm:$0x3]
        %v222 = vld [vmem:[%s191] sm:$0x3]
        %v223 = vld [vmem:[%s191 + $0x2] sm:$0x3]
        %v224 = vld [vmem:[%s191 + $0x4] sm:$0x3]
        %v225 = vld [vmem:[%s191 + $0x6] sm:$0x3]
        %p226 = scmp.eq.s32.totalorder %s24, 0
        // Predicated region
        $region37: #{tpu_custom_call.1} parent=27 // pred_check
          %p227 = pneg %p226
        $region38: #{tpu_custom_call.1} parent=27 // pred_check_branch
          %229 = sbr.rel (%p227) target = $region40
        $region39: #{tpu_custom_call.1} parent=27 // pred_region
          %230 = vst [vmem:[#allocation2] sm:$0xff] 0.0
          %vm231 = vcmask 1041408
          %v232 = vsel %vm231, %v218, 0.0
          %v233 = vsel %vm231, %v219, 0.0
          %v234 = vadd.f32 %v232, %v233
          %v235 = vsel %vm231, %v220, 0.0
          %v236 = vadd.f32 %v234, %v235
          %v237 = vsel %vm231, %v221, 0.0
          %v238 = vadd.f32 %v236, %v237
          %239 = vadd.xlane.f32.xlu0 %v238
          %v240 = vpop.xlane.xlu0 %239
          %v241 = vrot.slane %v240, 4
          %v242 = vadd.f32 %v240, %v241
          %v243 = vrot.slane %v242, 2
          %v244 = vadd.f32 %v242, %v243
          %v245 = vrot.slane %v244, 1
          %v246 = vadd.f32 %v244, %v245
          %v247 = vmul.f32 %v246, 0.0009765625
          %v248 = vsel %vm231, %v222, 0.0
          %v249 = vsel %vm231, %v223, 0.0
          %v250 = vadd.f32 %v248, %v249
          %v251 = vsel %vm231, %v224, 0.0
          %v252 = vadd.f32 %v250, %v251
          %v253 = vsel %vm231, %v225, 0.0
          %v254 = vadd.f32 %v252, %v253
          %255 = vadd.xlane.f32.xlu0 %v254
          %v256 = vpop.xlane.xlu0 %255
          %v257 = vrot.slane %v256, 4
          %v258 = vadd.f32 %v256, %v257
          %v259 = vrot.slane %v258, 2
          %v260 = vadd.f32 %v258, %v259
          %v261 = vrot.slane %v260, 1
          %v262 = vadd.f32 %v260, %v261
          %v263 = vmul.f32 %v262, 0.0009765625
          %264 = vst [vmem:[#allocation2 + $0x6] sm:$0x1] %v247
          %265 = vst [vmem:[#allocation2 + $0x7] sm:$0x1] %v263
        $region40: #{tpu_custom_call.1} parent=27 // pred_fallthru
          _
        %v266 = vld [vmem:[#allocation2 + $0x6] sm:$0x1]
        %v267 = vld [vmem:[#allocation2 + $0x7] sm:$0x1]
        %v268 = vlaneseq
        %v269 = vshrl.u32 %v268, 7
        %v270 = vsub.s32 0, %v269
        %v271 = vrot.slane %v266, %v270
        %v272 = vsub.f32 %v218, %v271
        %v273 = vsub.f32 %v219, %v271
        %v274 = vsub.f32 %v220, %v271
        %v275 = vsub.f32 %v221, %v271
        %v276 = vlaneseq
        %v277 = vshrl.u32 %v276, 7
        %v278 = vsub.s32 0, %v277
        %v279 = vrot.slane %v267, %v278
        %v280 = vsub.f32 %v222, %v279
        %v281 = vsub.f32 %v223, %v279
        %v282 = vsub.f32 %v224, %v279
        %v283 = vsub.f32 %v225, %v279
        %vm284 = vcmask 1041408
        %v285 = vsel %vm284, %v272, -inf
        %v286 = vsel %vm284, %v273, -inf
        %v287 = vsel %vm284, %v274, -inf
        %v288 = vsel %vm284, %v275, -inf
        %v289 = vmax.f32 %v285, %v286
        %v290 = vmax.f32 %v287, %v288
        %v291 = vmax.f32 %v289, %v290
        %v292 = vsub.f32 %v272, %v291
        %v293 = vsub.f32 %v273, %v291
        %v294 = vsub.f32 %v274, %v291
        %v295 = vsub.f32 %v275, %v291
        %v296 = vsel %vm284, %v280, -inf
        %v297 = vsel %vm284, %v281, -inf
        %v298 = vsel %vm284, %v282, -inf
        %v299 = vsel %vm284, %v283, -inf
        %v300 = vmax.f32 %v296, %v297
        %v301 = vmax.f32 %v298, %v299
        %v302 = vmax.f32 %v300, %v301
        %v303 = vsub.f32 %v280, %v302
        %v304 = vsub.f32 %v281, %v302
        %v305 = vsub.f32 %v282, %v302
        %v306 = vsub.f32 %v283, %v302
        %v307 = vmul.f32 %v292, 1.442695
        %v308 = vpow.pop %v307
        %v309 = vmul.f32 %v293, 1.442695
        %v310 = vpow.pop %v309
        %v311 = vmul.f32 %v294, 1.442695
        %v312 = vpow.pop %v311
        %v313 = vmul.f32 %v295, 1.442695
        %v314 = vpow.pop %v313
        %v315 = vmul.f32 %v303, 1.442695
        %v316 = vpow.pop %v315
        %v317 = vmul.f32 %v304, 1.442695
        %v318 = vpow.pop %v317
        %v319 = vmul.f32 %v305, 1.442695
        %v320 = vpow.pop %v319
        %v321 = vmul.f32 %v306, 1.442695
        %v322 = vpow.pop %v321
        %v323 = vsel %vm284, %v308, 0.0
        %v324 = vsel %vm284, %v310, 0.0
        %v325 = vadd.f32 %v323, %v324
        %v326 = vsel %vm284, %v312, 0.0
        %v327 = vadd.f32 %v325, %v326
        %v328 = vsel %vm284, %v314, 0.0
        %v329 = vadd.f32 %v327, %v328
        %v330 = vsel %vm284, %v316, 0.0
        %v331 = vsel %vm284, %v318, 0.0
        %v332 = vadd.f32 %v330, %v331
        %v333 = vsel %vm284, %v320, 0.0
        %v334 = vadd.f32 %v332, %v333
        %v335 = vsel %vm284, %v322, 0.0
        %v336 = vadd.f32 %v334, %v335
        %v337 = vsub.f32 %v303, %v292
        %v338 = vsub.f32 %v304, %v293
        %v339 = vsub.f32 %v305, %v294
        %v340 = vsub.f32 %v306, %v295
        %v341 = vmul.f32 %v316, %v337
        %v342 = vmul.f32 %v318, %v338
        %v343 = vmul.f32 %v320, %v339
        %v344 = vmul.f32 %v322, %v340
        %v345 = vsel %vm284, %v341, 0.0
        %v346 = vsel %vm284, %v342, 0.0
        %v347 = vadd.f32 %v345, %v346
        %v348 = vsel %vm284, %v343, 0.0
        %v349 = vadd.f32 %v347, %v348
        %v350 = vsel %vm284, %v344, 0.0
        %v351 = vadd.f32 %v349, %v350
        %v352 = vrcp.pop %v336
        %v353 = vmul.f32 %v351, %v352
        %v354 = vlog2.pop %v329
        %v355 = vmul.f32 %v354, 0.6931472
        %v356 = vlog2.pop %v336
        %v357 = vmul.f32 %v356, 0.6931472
        %v358 = vsub.f32 %v355, %v357
        %v359 = vadd.f32 %v353, %v358
        %v360 = vld [vmem:[#allocation2] sm:$0x1]
        %v361 = vsel %vm284, %v359, 0.0
        %v362 = vrot.slane %v361, 4
        %v363 = vadd.f32 %v361, %v362
        %v364 = vrot.slane %v363, 2
        %v365 = vadd.f32 %v363, %v364
        %v366 = vrot.slane %v365, 1
        %v367 = vadd.f32 %v365, %v366
        %v368 = vadd.f32 %v360, %v367
        %369 = vst [vmem:[#allocation2] sm:$0x1] %v368
        %v370 = vld [vmem:[#allocation2 + $0x1] sm:$0x1]
        %v371 = vsel %vm284, %v272, 0.0
        %v372 = vsel %vm284, %v273, 0.0
        %v373 = vadd.f32 %v371, %v372
        %v374 = vsel %vm284, %v274, 0.0
        %v375 = vadd.f32 %v373, %v374
        %v376 = vsel %vm284, %v275, 0.0
        %v377 = vadd.f32 %v375, %v376
        %v378 = vrot.slane %v377, 4
        %v379 = vadd.f32 %v377, %v378
        %v380 = vrot.slane %v379, 2
        %v381 = vadd.f32 %v379, %v380
        %v382 = vrot.slane %v381, 1
        %v383 = vadd.f32 %v381, %v382
        %v384 = vadd.f32 %v370, %v383
        %385 = vst [vmem:[#allocation2 + $0x1] sm:$0x1] %v384
        %v386 = vld [vmem:[#allocation2 + $0x2] sm:$0x1]
        %v387 = vsel %vm284, %v280, 0.0
        %v388 = vsel %vm284, %v281, 0.0
        %v389 = vadd.f32 %v387, %v388
        %v390 = vsel %vm284, %v282, 0.0
        %v391 = vadd.f32 %v389, %v390
        %v392 = vsel %vm284, %v283, 0.0
        %v393 = vadd.f32 %v391, %v392
        %v394 = vrot.slane %v393, 4
        %v395 = vadd.f32 %v393, %v394
        %v396 = vrot.slane %v395, 2
        %v397 = vadd.f32 %v395, %v396
        %v398 = vrot.slane %v397, 1
        %v399 = vadd.f32 %v397, %v398
        %v400 = vadd.f32 %v386, %v399
        %401 = vst [vmem:[#allocation2 + $0x2] sm:$0x1] %v400
        %v402 = vld [vmem:[#allocation2 + $0x3] sm:$0x1]
        %v403 = vmul.f32 %v272, %v280
        %v404 = vmul.f32 %v273, %v281
        %v405 = vmul.f32 %v274, %v282
        %v406 = vmul.f32 %v275, %v283
        %v407 = vsel %vm284, %v403, 0.0
        %v408 = vsel %vm284, %v404, 0.0
        %v409 = vadd.f32 %v407, %v408
        %v410 = vsel %vm284, %v405, 0.0
        %v411 = vadd.f32 %v409, %v410
        %v412 = vsel %vm284, %v406, 0.0
        %v413 = vadd.f32 %v411, %v412
        %v414 = vrot.slane %v413, 4
        %v415 = vadd.f32 %v413, %v414
        %v416 = vrot.slane %v415, 2
        %v417 = vadd.f32 %v415, %v416
        %v418 = vrot.slane %v417, 1
        %v419 = vadd.f32 %v417, %v418
        %v420 = vadd.f32 %v402, %v419
        %421 = vst [vmem:[#allocation2 + $0x3] sm:$0x1] %v420
        %v422 = vld [vmem:[#allocation2 + $0x4] sm:$0x1]
        %v423 = vmul.f32 %v272, %v272
        %v424 = vmul.f32 %v273, %v273
        %v425 = vmul.f32 %v274, %v274
        %v426 = vmul.f32 %v275, %v275
        %v427 = vsel %vm284, %v423, 0.0
        %v428 = vsel %vm284, %v424, 0.0
        %v429 = vadd.f32 %v427, %v428
        %v430 = vsel %vm284, %v425, 0.0
        %v431 = vadd.f32 %v429, %v430
        %v432 = vsel %vm284, %v426, 0.0
        %v433 = vadd.f32 %v431, %v432
        %v434 = vrot.slane %v433, 4
        %v435 = vadd.f32 %v433, %v434
        %v436 = vrot.slane %v435, 2
        %v437 = vadd.f32 %v435, %v436
        %v438 = vrot.slane %v437, 1
        %v439 = vadd.f32 %v437, %v438
        %v440 = vadd.f32 %v422, %v439
        %441 = vst [vmem:[#allocation2 + $0x4] sm:$0x1] %v440
        %v442 = vld [vmem:[#allocation2 + $0x5] sm:$0x1]
        %v443 = vmul.f32 %v280, %v280
        %v444 = vmul.f32 %v281, %v281
        %v445 = vmul.f32 %v282, %v282
        %v446 = vmul.f32 %v283, %v283
        %v447 = vsel %vm284, %v443, 0.0
        %v448 = vsel %vm284, %v444, 0.0
        %v449 = vadd.f32 %v447, %v448
        %v450 = vsel %vm284, %v445, 0.0
        %v451 = vadd.f32 %v449, %v450
        %v452 = vsel %vm284, %v446, 0.0
        %v453 = vadd.f32 %v451, %v452
        %v454 = vrot.slane %v453, 4
        %v455 = vadd.f32 %v453, %v454
        %v456 = vrot.slane %v455, 2
        %v457 = vadd.f32 %v455, %v456
        %v458 = vrot.slane %v457, 1
        %v459 = vadd.f32 %v457, %v458
        %v460 = vadd.f32 %v442, %v459
        %461 = vst [vmem:[#allocation2 + $0x5] sm:$0x1] %v460
        // Predicated region
        $region41: #{tpu_custom_call.1} parent=27 // pred_check
          %p462 = pneg %p226
        $region42: #{tpu_custom_call.1} parent=27 // pred_check_branch
          %464 = sbr.rel (%p462) target = $region44
        $region43: #{tpu_custom_call.1} parent=27 // pred_region
          %v465 = vld [vmem:[#allocation2] sm:$0xff]
          %466 = vadd.xlane.f32.xlu0 %v465
          %v467 = vpop.xlane.xlu0 %466
          %v469 = vrot.slane %v467, 1
          %v471 = vmul.f32 %v467, %v469
          %v472 = vmul.f32 %v471, 0.0009765625
          %v474 = vrot.slane %v472, 6
          %v476 = vsub.f32 %v467, %v474
          %v477 = vmul.f32 %v467, %v467
          %v478 = vmul.f32 %v477, 0.0009765625
          %v480 = vrot.slane %v478, 5
          %v482 = vsub.f32 %v467, %v480
          %v483 = vadd.f32 %v482, 1e-06
          %v484 = vrsqrt.pop %v483
          %v485 = vmul.f32 %v483, %v484
          %vm486 = vcmp.eq.f32.partialorder %v483, inf
          %v487 = vsel %vm486, %v483, %v485
          %vm488 = vcmp.eq.f32.partialorder %v483, 0.0
          %v489 = vand.u32 %v483, 2147483648
          %v490 = vsel %vm488, %v489, %v487
          %v491 = vsub.f32 0.0, %v476
          %v493 = vrot.slane %v490, 1
          %v495 = vmul.f32 %v490, %v493
          %v496 = vadd.f32 %v495, 1e-06
          %v498 = vrot.slane %v496, 1
          %v500 = vrcp.pop %v498
          %v501 = vmul.f32 %v491, %v500
          %v502 = vmul.f32 %v467, 0.1
          %v504 = vrot.slane %v501, 3
          %v506 = vadd.f32 %v502, %v504
          %vm507 = vcmask 0
          %508 = vst.msk [vmem:[%s217] sm:$0x1] %vm507, %v506
        $region44: #{tpu_custom_call.1} parent=27 // pred_fallthru
          _
        %p509 = scmp.lt.s32.totalorder %s23, 1
        %s510 = scalar_select %p509, %s23, 1
        %s511 = scalar_lea.vmem %s2, %s510
        // Predicated region
        $region45: #{tpu_custom_call.1} parent=27 // pred_check
          %p512 = pneg %p105
        $region46: #{tpu_custom_call.1} parent=27 // pred_check_branch
          %514 = sbr.rel (%p512) target = $region48
        $region47: #{tpu_custom_call.1} parent=27 // pred_region
          _
        $region48: #{tpu_custom_call.1} parent=27 // pred_fallthru
          _
      $region28: #{tpu_custom_call.1} parent=5 // pred_fallthru
        _
      %p515 = scmp.le.s32.totalorder 2, %s14
      // Predicated region
      $region49: #{tpu_custom_call.1} parent=5 // pred_check
        %p516 = pneg %p515
      $region50: #{tpu_custom_call.1} parent=5 // pred_check_branch
        %518 = sbr.rel (%p516) target = $region52
      $region51: #{tpu_custom_call.1} parent=5 // pred_region
        %s519 = ssub.s32 %s14, 2
        // Predicated region
        $region53: #{tpu_custom_call.1} parent=51 // pred_check
          %p520 = pneg %p111
        $region54: #{tpu_custom_call.1} parent=51 // pred_check_branch
          %522 = sbr.rel (%p520) target = $region56
        $region55: #{tpu_custom_call.1} parent=51 // pred_region
          %p523 = scmp.lt.s32.totalorder %s25, 1
          %s524 = scalar_select %p523, %s25, 1
          %s525 = scalar_lea.vmem %s2, %s524
        $region56: #{tpu_custom_call.1} parent=51 // pred_fallthru
          _
      $region52: #{tpu_custom_call.1} parent=5 // pred_fallthru
        _
    $region6: #{tpu_custom_call.1} parent=1 // loop_footer
      %s18 = sadd.s32 1, %s14
    $region7: #{tpu_custom_call.1} parent=1 // loop_footer_branch
      %13 = sbr.rel target = $region3
    $region8: #{tpu_custom_call.1} parent=1 // loop_exit
      _
    %526 = vsyncpa [#allocation4], 1
    %s527 = scalar_lea.sflag [#allocation4], 1
    %528 = vsyncpa %s527, 1
    %529 = vsyncpa [#allocation6], 1
    %s530 = scalar_lea.sflag [#allocation6], 1
    %531 = vsyncpa %s530, 1

</llo_original>
